<compile_context>
chip_gen: v7x
topology: tpu7x:2x2x1
jax: 0.10.0
libtpu: 0.0.40
codegen_flags: <defaults>
</compile_context>

<pallas_src>
import jax
import jax.numpy as jnp
from jax import lax
from jax.experimental import pallas as pl
from jax.experimental.pallas import tpu as pltpu


_INV_SQRT2 = 0.7071067811865476


def _round_up(x, m):
    return (x + m - 1) // m * m


def _cdiv(a, b):
    return (a + b - 1) // b


def _tpu_info():
    """(generation tag, VMEM capacity bytes) with safe fallbacks."""
    kind = ""
    try:
        kind = jax.devices()[0].device_kind.lower()
    except Exception:
        pass
    if "v7" in kind or "7x" in kind:
        gen = "v7x"
    elif "v6" in kind:
        gen = "v6e"
    elif "v5" in kind:
        gen = "v5e"
    else:
        gen = "unknown"
    vmem = None
    try:
        vmem = int(pltpu.get_tpu_info().vmem_capacity_bytes)
    except Exception:
        vmem = None
    if vmem is None or vmem <= 0:
        vmem = (64 << 20) if gen in ("v7x", "unknown") else (128 << 20)
    return gen, vmem


def _pick_row_tile(M, target_tm, *, min_tiles=1, sublane=16, max_ghost_frac=0.125):
    """Row tile: big for arithmetic intensity, but cap ghost-row waste and keep
    enough row tiles to shard across cores. Returns (tm, M_pad)."""
    m_sub = _round_up(max(M, 1), sublane)
    tm = min(_round_up(target_tm, sublane), m_sub)

    def ghost(t):
        mp = _round_up(m_sub, t)
        return (mp - M) / mp

    while tm > 128 and (ghost(tm) > max_ghost_frac or _cdiv(m_sub, tm) < min_tiles):
        tm = max(128, _round_up(tm // 2, sublane))
    return tm, _round_up(m_sub, tm)


def _pick_hidden_tile(H128, target_lanes):
    """Hidden chunk th (multiple of 128) that exactly (or near-exactly) tiles
    H128, preferring sizes near target_lanes*128. Returns (th, H_pad)."""
    L = H128 // 128
    if L <= target_lanes:
        return H128, H128
    lo = max(1, target_lanes // 2)
    hi = min(L, 2 * target_lanes)
    best = None
    for c in range(lo, hi + 1):
        n = _cdiv(L, c)
        waste = n * c - L
        score = (waste, abs(c - target_lanes))
        if best is None or score < best[1]:
            best = (c, score)
    c = best[0]
    th = c * 128
    return th, _cdiv(L, c) * th


def _gelu_exact(h):
    # nn.GELU default: exact erf formulation, computed in f32 (VPU/EUP).
    return 0.5 * h * (1.0 + lax.erf(h * jnp.float32(_INV_SQRT2)))


def _mlp_resident_kernel(x_ref, w1_ref, b1_ref, w2_ref, b2_ref, o_ref):
    # Weights fully resident in VMEM; 1-D grid over row tiles, single dot over
    # the whole hidden dim (weights stream from HBM exactly once).
    x = x_ref[...].astype(w1_ref.dtype)          # in-kernel cast, hidden under MXU
    h = jnp.dot(x, w1_ref[...], preferred_element_type=jnp.float32)
    h = _gelu_exact(h + b1_ref[...])
    o = jnp.dot(h.astype(w2_ref.dtype), w2_ref[...],
                preferred_element_type=jnp.float32)
    o_ref[...] = (o + b2_ref[...]).astype(o_ref.dtype)   # dropout(p=0) == identity


def _mlp_chunked_kernel(x_ref, w1_ref, b1_ref, w2_ref, b2_ref, o_ref, acc_ref):
    # grid = (row tiles, hidden chunks); axis 1 is the reduction over H.
    j = pl.program_id(1)

    @pl.when(j == 0)
    def _():
        acc_ref[...] = jnp.zeros_like(acc_ref)

    x = x_ref[...].astype(w1_ref.dtype)
    h = jnp.dot(x, w1_ref[...], preferred_element_type=jnp.float32)
    h = _gelu_exact(h + b1_ref[...])
    acc_ref[...] += jnp.dot(h.astype(w2_ref.dtype), w2_ref[...],
                            preferred_element_type=jnp.float32)

    @pl.when(j == pl.num_programs(1) - 1)
    def _():
        o_ref[...] = (acc_ref[...] + b2_ref[...]).astype(o_ref.dtype)


def mlp_pallas(x, w1, b1, w2, b2, *, tm=None, th=None,
               compute_dtype=jnp.bfloat16, residency_bytes_cap=None):
    """ViT MLP forward (fc1 -> GELU -> fc2, dropout p=0).

    x: (B, N, C); w1: (C, H); b1: (H,); w2: (H, O); b2: (O,).
    Weights are stored (in, out), i.e. already transposed vs. nn.Linear.weight.
    Returns (B, N, O) in x.dtype. For best performance, pre-cast weights to
    `compute_dtype` once outside the per-step path.
    """
    B, N, C = x.shape
    H = w1.shape[1]
    O = w2.shape[1]
    M = B * N
    out_dtype = x.dtype
    x_bytes = jnp.dtype(x.dtype).itemsize
    w_bytes = jnp.dtype(compute_dtype).itemsize
    o_bytes = jnp.dtype(out_dtype).itemsize

    gen, vmem_cap = _tpu_info()
    # Roofline-targeted row tiles (flops per weight byte ~ tm):
    #   v5e ~240, v7x ~310, v6e ~650 flops/byte needed.
    target_tm = {"v5e": 384, "v6e": 1024, "v7x": 512}.get(gen, 512) if tm is None else tm
    min_tiles = 2 if gen == "v7x" else 1   # keep both v7x TensorCores busy
    tm, M_pad = _pick_row_tile(M, target_tm, min_tiles=min_tiles)

    C_pad = _round_up(C, 128)
    O_pad = _round_up(O, 128)
    H128 = _round_up(H, 128)

    def resident_bytes(h_pad):
        return (2 * (C_pad * h_pad + h_pad * O_pad) * w_bytes   # dbl-buffered weights
                + 2 * (h_pad + O_pad) * 4                       # biases (f32)
                + 2 * tm * C_pad * x_bytes                      # x tile
                + 2 * tm * O_pad * o_bytes                      # out tile
                + tm * h_pad * (4 + w_bytes))                   # hidden intermediate

    cap = int(0.8 * vmem_cap) if residency_bytes_cap is None else int(residency_bytes_cap)
    use_resident = resident_bytes(H128) <= cap

    def pad2(a, rows, cols):
        pr, pc = rows - a.shape[0], cols - a.shape[1]
        return a if (pr == 0 and pc == 0) else jnp.pad(a, ((0, pr), (0, pc)))

    # Activations stay in their stored dtype (cast to bf16 inside the kernel);
    # pad only when actually required.  Zero padding is exact: padded x cols /
    # w1 rows contribute 0, padded hidden units are GELU(0)=0 against zero rows
    # of w2, padded output cols are sliced off below.
    x2d = pad2(x.reshape(M, C), M_pad, C_pad)
    b1r = b1.reshape(1, -1).astype(jnp.float32)
    b2r = b2.reshape(1, -1).astype(jnp.float32)

    if use_resident:
        H_pad = H128
        w1p = pad2(w1.astype(compute_dtype), C_pad, H_pad)
        w2p = pad2(w2.astype(compute_dtype), H_pad, O_pad)
        b1p = pad2(b1r, 1, H_pad)
        b2p = pad2(b2r, 1, O_pad)

        est = resident_bytes(H_pad)
        vmem_limit = int(min(int(0.85 * vmem_cap),
                             max(int(1.25 * est) + (8 << 20), 32 << 20)))
        cost = pl.CostEstimate(
            flops=2 * M_pad * H_pad * (C_pad + O_pad),
            transcendentals=M_pad * H_pad,
            bytes_accessed=(M_pad * C_pad * x_bytes
                            + (C_pad * H_pad + H_pad * O_pad) * w_bytes
                            + (H_pad + O_pad) * 4
                            + M_pad * O_pad * o_bytes))

        out2d = pl.pallas_call(
            _mlp_resident_kernel,
            out_shape=jax.ShapeDtypeStruct((M_pad, O_pad), out_dtype),
            grid_spec=pltpu.PrefetchScalarGridSpec(
                num_scalar_prefetch=0,
                grid=(M_pad // tm,),
                in_specs=[
                    pl.BlockSpec((tm, C_pad), lambda i: (i, 0)),      # token rows
                    # TODO(synk): mark the constant weight/bias blocks below with
                    # pipeline_mode=pl.Buffered(1) once single-buffering is
                    # verified on the target jax build (halves resident VMEM).
                    pl.BlockSpec((C_pad, H_pad), lambda i: (0, 0)),   # fc1 weight
                    pl.BlockSpec((1, H_pad), lambda i: (0, 0)),       # fc1 bias
                    pl.BlockSpec((H_pad, O_pad), lambda i: (0, 0)),   # fc2 weight
                    pl.BlockSpec((1, O_pad), lambda i: (0, 0)),       # fc2 bias
                ],
                out_specs=pl.BlockSpec((tm, O_pad), lambda i: (i, 0)),
            ),
            compiler_params=pltpu.CompilerParams(
                dimension_semantics=("parallel",),
                vmem_limit_bytes=vmem_limit,
            ),
            cost_estimate=cost,
        )(x2d, w1p, b1p, w2p, b2p)
    else:
        # H-chunked reduction path (weights too big to keep fully resident).
        target_lanes = 8 if gen == "v7x" else 4
        if th is None:
            th, H_pad = _pick_hidden_tile(H128, target_lanes)
        else:
            th = max(128, _round_up(min(th, H128), 128))
            H_pad = _round_up(H128, th)

        w1p = pad2(w1.astype(compute_dtype), C_pad, H_pad)
        w2p = pad2(w2.astype(compute_dtype), H_pad, O_pad)
        b1p = pad2(b1r, 1, H_pad)
        b2p = pad2(b2r, 1, O_pad)

        est = (2 * tm * C_pad * x_bytes          # x tile
               + 2 * C_pad * th * w_bytes        # fc1 weight slab
               + 2 * th * O_pad * w_bytes        # fc2 weight slab
               + 2 * (th + O_pad) * 4            # bias slabs
               + 2 * tm * O_pad * o_bytes        # output tile
               + tm * O_pad * 4                  # f32 accumulator
               + tm * th * (4 + w_bytes))        # hidden-chunk intermediates
        vmem_limit = int(min(int(0.85 * vmem_cap),
                             max(int(1.25 * est) + (8 << 20), 32 << 20)))
        n_row = M_pad // tm
        cost = pl.CostEstimate(
            flops=2 * M_pad * H_pad * (C_pad + O_pad),
            transcendentals=M_pad * H_pad,
            bytes_accessed=(M_pad * C_pad * x_bytes
                            + n_row * (C_pad * H_pad + H_pad * O_pad) * w_bytes
                            + n_row * (H_pad + O_pad) * 4
                            + M_pad * O_pad * o_bytes))

        out2d = pl.pallas_call(
            _mlp_chunked_kernel,
            out_shape=jax.ShapeDtypeStruct((M_pad, O_pad), out_dtype),
            grid_spec=pltpu.PrefetchScalarGridSpec(
                num_scalar_prefetch=0,
                grid=(n_row, H_pad // th),
                in_specs=[
                    pl.BlockSpec((tm, C_pad), lambda i, j: (i, 0)),   # token rows
                    pl.BlockSpec((C_pad, th), lambda i, j: (0, j)),   # fc1 weight slab
                    pl.BlockSpec((1, th), lambda i, j: (0, j)),       # fc1 bias slab
                    pl.BlockSpec((th, O_pad), lambda i, j: (j, 0)),   # fc2 weight slab
                    pl.BlockSpec((1, O_pad), lambda i, j: (0, 0)),    # fc2 bias
                ],
                out_specs=pl.BlockSpec((tm, O_pad), lambda i, j: (i, 0)),
                scratch_shapes=[pltpu.VMEM((tm, O_pad), jnp.float32)],
            ),
            compiler_params=pltpu.CompilerParams(
                dimension_semantics=("parallel", "arbitrary"),
                vmem_limit_bytes=vmem_limit,
            ),
            cost_estimate=cost,
        )(x2d, w1p, b1p, w2p, b2p)

    out = out2d
    if M_pad != M or O_pad != O:
        out = out[:M, :O]
    return out.reshape(B, N, O)


def mlp_reference(x, w1, b1, w2, b2, compute_dtype=jnp.bfloat16):
    # Mixed-precision reference matching the kernel (bf16 matmul inputs, f32 acc).
    B, N, C = x.shape
    xc = x.reshape(-1, C).astype(compute_dtype)
    h = jnp.dot(xc, w1.astype(compute_dtype),
                preferred_element_type=jnp.float32) + b1.reshape(1, -1)
    h = 0.5 * h * (1.0 + lax.erf(h * jnp.float32(_INV_SQRT2)))
    o = jnp.dot(h.astype(compute_dtype), w2.astype(compute_dtype),
                preferred_element_type=jnp.float32) + b2.reshape(1, -1)
    return o.reshape(B, N, -1).astype(x.dtype)


def mlp_reference_f32(x, w1, b1, w2, b2):
    h = jnp.einsum("bnc,ch->bnh", x, w1) + b1.reshape(-1)
    h = 0.5 * h * (1.0 + lax.erf(h * jnp.float32(_INV_SQRT2)))
    return jnp.einsum("bnh,ho->bno", h, w2) + b2.reshape(-1)


if __name__ == "__main__":
    key = jax.random.PRNGKey(0)
    k = jax.random.split(key, 10)

    # Case 1: small ViT-like shapes -> weights-resident fast path.
    B, N, C = 2, 8, 32
    H, O = 2 * C, C
    x = jax.random.normal(k[0], (B, N, C), dtype=jnp.float32)
    w1 = jax.random.normal(k[1], (C, H), dtype=jnp.float32) / jnp.sqrt(C)
    b1 = jax.random.normal(k[2], (H,), dtype=jnp.float32) * 0.01
    w2 = jax.random.normal(k[3], (H, O), dtype=jnp.float32) / jnp.sqrt(H)
    b2 = jax.random.normal(k[4], (O,), dtype=jnp.float32) * 0.01

    out = jax.block_until_ready(mlp_pallas(x, w1, b1, w2, b2))
    assert out.shape == (B, N, O)
    assert jnp.allclose(out, mlp_reference(x, w1, b1, w2, b2), atol=2e-3, rtol=2e-3)
    assert jnp.allclose(out, mlp_reference_f32(x, w1, b1, w2, b2),
                        atol=7.5e-2, rtol=7.5e-2)

    # Case 2: unaligned feature dims, force the H-chunked reduction path (2 chunks).
    C2, H2, O2 = 48, 256, 40
    x2 = jax.random.normal(k[5], (B, N, C2), dtype=jnp.float32)
    w1b = jax.random.normal(k[6], (C2, H2), dtype=jnp.float32) / jnp.sqrt(C2)
    b1b = jax.random.normal(k[7], (H2,), dtype=jnp.float32) * 0.01
    w2b = jax.random.normal(k[8], (H2, O2), dtype=jnp.float32) / jnp.sqrt(H2)
    b2b = jax.random.normal(k[9], (O2,), dtype=jnp.float32) * 0.01

    out2 = jax.block_until_ready(
        mlp_pallas(x2, w1b, b1b, w2b, b2b, th=128, residency_bytes_cap=0))
    assert out2.shape == (B, N, O2)
    assert jnp.allclose(out2, mlp_reference(x2, w1b, b1b, w2b, b2b),
                        atol=2e-3, rtol=2e-3)
    assert jnp.allclose(out2, mlp_reference_f32(x2, w1b, b1b, w2b, b2b),
                        atol=7.5e-2, rtol=7.5e-2)

    print("KERNEL_OK")
</pallas_src>

<mosaic_0001>
module attributes {stable_mosaic.version = 11 : i64} {
  func.func @_mlp_resident_kernel(%arg0: i32, %arg1: memref<16x128xf32, #tpu.memory_space<vmem>>, %arg2: memref<128x128xbf16, #tpu.memory_space<vmem>>, %arg3: memref<1x128xf32, #tpu.memory_space<vmem>>, %arg4: memref<128x128xbf16, #tpu.memory_space<vmem>>, %arg5: memref<1x128xf32, #tpu.memory_space<vmem>>, %arg6: memref<16x128xf32, #tpu.memory_space<vmem>>) attributes {dimension_semantics = [#tpu.dimension_semantics<parallel>], iteration_bounds = array<i64: 1>, scalar_prefetch = 0 : i64, scratch_operands = 0 : i64, tpu.core_type = #tpu.core_type<tc>, window_params = [{transform_indices = @transform_0, window_bounds = array<i64: 16, 128>}, {pipeline_mode = #tpu.pipeline_mode<synchronous>, transform_indices = @transform_1, window_bounds = array<i64: 128, 128>}, {pipeline_mode = #tpu.pipeline_mode<synchronous>, transform_indices = @transform_2, window_bounds = array<i64: 1, 128>}, {pipeline_mode = #tpu.pipeline_mode<synchronous>, transform_indices = @transform_3, window_bounds = array<i64: 128, 128>}, {pipeline_mode = #tpu.pipeline_mode<synchronous>, transform_indices = @transform_4, window_bounds = array<i64: 1, 128>}, {transform_indices = @transform_5, window_bounds = array<i64: 16, 128>}]} {
    %c0 = arith.constant 0 : index
    %c0_0 = arith.constant 0 : index
    %0 = vector.load %arg1[%c0, %c0_0] : memref<16x128xf32, #tpu.memory_space<vmem>>, vector<16x128xf32>
    %1 = arith.truncf %0 : vector<16x128xf32> to vector<16x128xbf16>
    %c0_1 = arith.constant 0 : index
    %c0_2 = arith.constant 0 : index
    %2 = vector.load %arg2[%c0_1, %c0_2] : memref<128x128xbf16, #tpu.memory_space<vmem>>, vector<128x128xbf16>
    %cst = arith.constant dense<0.000000e+00> : vector<16x128xf32>
    %3 = tpu.matmul %1, %2, %cst {dimension_numbers = #tpu.dot_dimension_numbers<[1], [0], [0], [1], [0, 0, 1, 1], [], []>} : vector<16x128xbf16>, vector<128x128xbf16>, vector<16x128xf32> -> vector<16x128xf32>
    %c0_3 = arith.constant 0 : index
    %c0_4 = arith.constant 0 : index
    %4 = vector.load %arg3[%c0_3, %c0_4] : memref<1x128xf32, #tpu.memory_space<vmem>>, vector<1x128xf32>
    %5 = vector.broadcast %4 : vector<1x128xf32> to vector<16x128xf32>
    %6 = arith.addf %3, %5 : vector<16x128xf32>
    %cst_5 = arith.constant 5.000000e-01 : f32
    %7 = vector.broadcast %cst_5 : f32 to vector<16x128xf32>
    %8 = arith.mulf %7, %6 : vector<16x128xf32>
    %cst_6 = arith.constant 0.707106769 : f32
    %9 = vector.broadcast %cst_6 : f32 to vector<16x128xf32>
    %10 = arith.mulf %6, %9 : vector<16x128xf32>
    %11 = math.erf %10 : vector<16x128xf32>
    %cst_7 = arith.constant 1.000000e+00 : f32
    %12 = vector.broadcast %cst_7 : f32 to vector<16x128xf32>
    %13 = arith.addf %12, %11 : vector<16x128xf32>
    %14 = arith.mulf %8, %13 : vector<16x128xf32>
    %15 = arith.truncf %14 : vector<16x128xf32> to vector<16x128xbf16>
    %c0_8 = arith.constant 0 : index
    %c0_9 = arith.constant 0 : index
    %16 = vector.load %arg4[%c0_8, %c0_9] : memref<128x128xbf16, #tpu.memory_space<vmem>>, vector<128x128xbf16>
    %cst_10 = arith.constant dense<0.000000e+00> : vector<16x128xf32>
    %17 = tpu.matmul %15, %16, %cst_10 {dimension_numbers = #tpu.dot_dimension_numbers<[1], [0], [0], [1], [0, 0, 1, 1], [], []>} : vector<16x128xbf16>, vector<128x128xbf16>, vector<16x128xf32> -> vector<16x128xf32>
    %c0_11 = arith.constant 0 : index
    %c0_12 = arith.constant 0 : index
    %18 = vector.load %arg5[%c0_11, %c0_12] : memref<1x128xf32, #tpu.memory_space<vmem>>, vector<1x128xf32>
    %19 = vector.broadcast %18 : vector<1x128xf32> to vector<16x128xf32>
    %20 = arith.addf %17, %19 : vector<16x128xf32>
    %c0_13 = arith.constant 0 : index
    %c0_14 = arith.constant 0 : index
    %21 = vector.load %arg6[%c0_13, %c0_14] : memref<16x128xf32, #tpu.memory_space<vmem>>, vector<16x128xf32>
    tpu.vector_store %arg6[%c0_13, %c0_14], %20 {strides = array<i32>} : memref<16x128xf32, #tpu.memory_space<vmem>>, vector<16x128xf32>,
    return
  }
  func.func @transform_0(%arg0: i32) -> (i32, i32) {
    %c0_i32 = arith.constant 0 : i32
    %c0_i32_0 = arith.constant 0 : i32
    return %arg0, %c0_i32 : i32, i32
  }
  func.func @transform_1(%arg0: i32) -> (i32, i32) {
    %c0_i32 = arith.constant 0 : i32
    %c0_i32_0 = arith.constant 0 : i32
    %c0_i32_1 = arith.constant 0 : i32
    return %c0_i32, %c0_i32_0 : i32, i32
  }
  func.func @transform_2(%arg0: i32) -> (i32, i32) {
    %c0_i32 = arith.constant 0 : i32
    %c0_i32_0 = arith.constant 0 : i32
    %c0_i32_1 = arith.constant 0 : i32
    return %c0_i32, %c0_i32_0 : i32, i32
  }
  func.func @transform_3(%arg0: i32) -> (i32, i32) {
    %c0_i32 = arith.constant 0 : i32
    %c0_i32_0 = arith.constant 0 : i32
    %c0_i32_1 = arith.constant 0 : i32
    return %c0_i32, %c0_i32_0 : i32, i32
  }
  func.func @transform_4(%arg0: i32) -> (i32, i32) {
    %c0_i32 = arith.constant 0 : i32
    %c0_i32_0 = arith.constant 0 : i32
    %c0_i32_1 = arith.constant 0 : i32
    return %c0_i32, %c0_i32_0 : i32, i32
  }
  func.func @transform_5(%arg0: i32) -> (i32, i32) {
    %c0_i32 = arith.constant 0 : i32
    %c0_i32_0 = arith.constant 0 : i32
    return %arg0, %c0_i32 : i32, i32
  }
}

</mosaic_0001>

<llo_original>
// kernel: tpu_custom_call.1
$region0: #{tpu_custom_call.1}
  #allocation0 [shape = 'u32[]', space=smem, size = 0x4, offset = 0x4, fixed_abs, tag = 'smem constant byte address 0x4 - core index']
  #allocation1 [shape = 'u32[144,128]{1,0:T(1,128)}', space=vmem, size = 0x12000, scoped, tag = 'internal scratch']
  %s0 = inlined_call_operand.hbm [shape: f32[16,128], index: 0, kind: input, shape index: {}]
  %s1 = inlined_call_operand.hbm [shape: bf16[128,128], index: 1, kind: input, shape index: {}]
  %s2 = inlined_call_operand.vmem [shape: f32[1,128], index: 2, kind: input, shape index: {}]
  %s3 = inlined_call_operand.hbm [shape: bf16[128,128], index: 3, kind: input, shape index: {}]
  %s4 = inlined_call_operand.vmem [shape: f32[1,128], index: 4, kind: input, shape index: {}]
  %s5 = inlined_call_operand.hbm [shape: f32[16,128], index: 5, kind: output, shape index: {}]
  %s6 = sld [smem:[#allocation0]]
  $region42: #{tpu_custom_call.1} parent=0
    _
  %s8 = ssub.s32 1, %s6
  %s9 = scalar_select 0, %s8, %s6
  $region1: #{tpu_custom_call.1} parent=0
    #allocation2 [shape = 'u8[8192]{0}', space=vmem, size = 0x2000, scoped, tag = 'input window, operand 0, single buffered']
    #allocation3 [shape = 's32[1]{0}', space=sflag, size = 0x4, scoped, tag = 'scoped memory for tpu_custom_call.1']
    #allocation4 [shape = 's32[1]{0}', space=sflag, size = 0x4, scoped, tag = 'scoped memory for tpu_custom_call.1']
    #allocation5 [shape = 'u8[32768]{0}', space=vmem, size = 0x8000, scoped, tag = 'input window, operand 1, single buffered']
    #allocation6 [shape = 's32[1]{0}', space=sflag, size = 0x4, scoped, tag = 'scoped memory for tpu_custom_call.1']
    #allocation7 [shape = 'u8[32768]{0}', space=vmem, size = 0x8000, scoped, tag = 'input window, operand 3, single buffered']
    #allocation8 [shape = 'u8[8192]{0}', space=vmem, size = 0x2000, scoped, tag = 'output window, operand 0, single buffered']
    %10 = vsyncpa [#allocation3], 0
    %11 = vsyncpa [#allocation6], 0
    %12 = vsyncpa [#allocation4], 0
    // Predicated region
    $region2: #{tpu_custom_call.1} parent=1 // pred_check
      _
    $region3: #{tpu_custom_call.1} parent=1 // pred_check_branch
      %14 = sbr.rel (0) target = $region5
    $region4: #{tpu_custom_call.1} parent=1 // pred_region
      %s16 = ssub.s32 256, 256
      %17 = vsyncadd [#allocation3], %s16
      %s18 = sshll.u32 [#allocation2], 4
      %s19 = int_to_ptr.vmem [resolvable:$true] %s18
      %24 = dma.hbm_to_vmem [thread:$0]  %s0, 256, %s19, [#allocation3], 128, 128, 8
    $region5: #{tpu_custom_call.1} parent=1 // pred_fallthru
      _
    // Predicated region
    $region6: #{tpu_custom_call.1} parent=1 // pred_check
      _
    $region7: #{tpu_custom_call.1} parent=1 // pred_check_branch
      %26 = sbr.rel (0) target = $region9
    $region8: #{tpu_custom_call.1} parent=1 // pred_region
      %s28 = ssub.s32 1024, 1024
      %29 = vsyncadd [#allocation6], %s28
      %s30 = sshll.u32 [#allocation5], 4
      %s31 = int_to_ptr.vmem [resolvable:$true] %s30
      %36 = dma.hbm_to_vmem [thread:$0]  %s1, 1024, %s31, [#allocation6], 64, 64, 4
    $region9: #{tpu_custom_call.1} parent=1 // pred_fallthru
      _
    // Predicated region
    $region10: #{tpu_custom_call.1} parent=1 // pred_check
      _
    $region11: #{tpu_custom_call.1} parent=1 // pred_check_branch
      %38 = sbr.rel (0) target = $region13
    $region12: #{tpu_custom_call.1} parent=1 // pred_region
      _
    $region13: #{tpu_custom_call.1} parent=1 // pred_fallthru
      _
    // Predicated region
    $region14: #{tpu_custom_call.1} parent=1 // pred_check
      _
    $region15: #{tpu_custom_call.1} parent=1 // pred_check_branch
      %40 = sbr.rel (0) target = $region17
    $region16: #{tpu_custom_call.1} parent=1 // pred_region
      %s42 = ssub.s32 1024, 1024
      %43 = vsyncadd [#allocation6], %s42
      %s44 = sshll.u32 [#allocation7], 4
      %s45 = int_to_ptr.vmem [resolvable:$true] %s44
      %50 = dma.hbm_to_vmem [thread:$0]  %s3, 1024, %s45, [#allocation6], 64, 64, 4
    $region17: #{tpu_custom_call.1} parent=1 // pred_fallthru
      _
    // Predicated region
    $region18: #{tpu_custom_call.1} parent=1 // pred_check
      _
    $region19: #{tpu_custom_call.1} parent=1 // pred_check_branch
      %52 = sbr.rel (0) target = $region21
    $region20: #{tpu_custom_call.1} parent=1 // pred_region
      _
    $region21: #{tpu_custom_call.1} parent=1 // pred_fallthru
      _
    // Predicated region
    $region22: #{tpu_custom_call.1} parent=1 // pred_check
      _
    $region23: #{tpu_custom_call.1} parent=1 // pred_check_branch
      %54 = sbr.rel (0) target = $region25
    $region24: #{tpu_custom_call.1} parent=1 // pred_region
      %55 = dma.done [#allocation3], 256
    $region25: #{tpu_custom_call.1} parent=1 // pred_fallthru
      _
    // Predicated region
    $region26: #{tpu_custom_call.1} parent=1 // pred_check
      _
    $region27: #{tpu_custom_call.1} parent=1 // pred_check_branch
      %57 = sbr.rel (0) target = $region29
    $region28: #{tpu_custom_call.1} parent=1 // pred_region
      %58 = dma.done [#allocation6], 1024
    $region29: #{tpu_custom_call.1} parent=1 // pred_fallthru
      _
    // Predicated region
    $region30: #{tpu_custom_call.1} parent=1 // pred_check
      _
    $region31: #{tpu_custom_call.1} parent=1 // pred_check_branch
      %60 = sbr.rel (0) target = $region33
    $region32: #{tpu_custom_call.1} parent=1 // pred_region
      %61 = dma.done [#allocation6], 1024
    $region33: #{tpu_custom_call.1} parent=1 // pred_fallthru
      _
    %v63 = vld [vmem:[#allocation2] sm:$0xff]
    %v64 = vld [vmem:[#allocation2 + $0x8] sm:$0xff]
    %v65 = vpack.c.bf16 %v64, %v63
    %v66 = vld [vmem:[#allocation5] sm:$0xf]
    %v67 = vld [vmem:[#allocation5 + $0x4] sm:$0xf]
    %v68 = vld [vmem:[#allocation5 + $0x8] sm:$0xf]
    %v69 = vld [vmem:[#allocation5 + $0xc] sm:$0xf]
    %v70 = vld [vmem:[#allocation5 + $0x10] sm:$0xf]
    %v71 = vld [vmem:[#allocation5 + $0x14] sm:$0xf]
    %v72 = vld [vmem:[#allocation5 + $0x18] sm:$0xf]
    %v73 = vld [vmem:[#allocation5 + $0x1c] sm:$0xf]
    %v74 = vld [vmem:[#allocation5 + $0x20] sm:$0xf]
    %v75 = vld [vmem:[#allocation5 + $0x24] sm:$0xf]
    %v76 = vld [vmem:[#allocation5 + $0x28] sm:$0xf]
    %v77 = vld [vmem:[#allocation5 + $0x2c] sm:$0xf]
    %v78 = vld [vmem:[#allocation5 + $0x30] sm:$0xf]
    %v79 = vld [vmem:[#allocation5 + $0x34] sm:$0xf]
    %v80 = vld [vmem:[#allocation5 + $0x38] sm:$0xf]
    %v81 = vld [vmem:[#allocation5 + $0x3c] sm:$0xf]
    %v82 = vld [vmem:[%s2] sm:$0x1]
    %v84 = vlaneseq
    %v85 = vshrl.u32 %v84, 7
    %v86 = vsub.s32 0, %v85
    %v87 = vrot.slane %v82, %v86
    %v105 = vunpack.c.l.b16 %v66
    %v106 = vunpack.c.l.b16 %v67
    %v107 = vunpack.c.l.b16 %v68
    %v108 = vunpack.c.l.b16 %v69
    %v109 = vunpack.c.l.b16 %v70
    %v110 = vunpack.c.l.b16 %v71
    %v111 = vunpack.c.l.b16 %v72
    %v112 = vunpack.c.l.b16 %v73
    %v113 = vunpack.c.l.b16 %v74
    %v114 = vunpack.c.l.b16 %v75
    %v115 = vunpack.c.l.b16 %v76
    %v116 = vunpack.c.l.b16 %v77
    %v117 = vunpack.c.l.b16 %v78
    %v118 = vunpack.c.l.b16 %v79
    %v119 = vunpack.c.l.b16 %v80
    %v120 = vunpack.c.l.b16 %v81
    %v121 = vpack.c.b16 %v106, %v105
    %v122 = vpack.c.b16 %v108, %v107
    %v123 = vpack.c.b16 %v110, %v109
    %v124 = vpack.c.b16 %v112, %v111
    %v125 = vpack.c.b16 %v114, %v113
    %v126 = vpack.c.b16 %v116, %v115
    %v127 = vpack.c.b16 %v118, %v117
    %v128 = vpack.c.b16 %v120, %v119
    %137 = vmatprep.subr.bf16.mxu0 0
    %138 = vmatpush1.bf16.msra.mxu0 %v121
    %139 = vmatprep.subr.bf16.mxu0 0
    %140 = vmatpush1.bf16.msra.mxu0 %v122
    %141 = vmatprep.subr.bf16.mxu0 0
    %142 = vmatpush1.bf16.msra.mxu0 %v123
    %143 = vmatprep.subr.bf16.mxu0 0
    %144 = vmatpush1.bf16.msra.mxu0 %v124
    %145 = vmatprep.subr.bf16.mxu0 0
    %146 = vmatpush1.bf16.msra.mxu0 %v125
    %147 = vmatprep.subr.bf16.mxu0 0
    %148 = vmatpush1.bf16.msra.mxu0 %v126
    %149 = vmatprep.subr.bf16.mxu0 0
    %150 = vmatpush1.bf16.msra.mxu0 %v127
    %151 = vmatprep.subr.bf16.mxu0 0
    %152 = vmatpush1.bf16.msra.mxu0 %v128
    %153 = vmatprep.subr.bf16.mxu0 0
    %154 = vmatpush1.bf16.msra.mxu0 0
    %155 = vmatprep.subr.bf16.mxu0 0
    %156 = vmatpush1.bf16.msra.mxu0 0
    %157 = vmatprep.subr.bf16.mxu0 0
    %158 = vmatpush1.bf16.msra.mxu0 0
    %159 = vmatprep.subr.bf16.mxu0 0
    %160 = vmatpush1.bf16.msra.mxu0 0
    %161 = vmatprep.subr.bf16.mxu0 0
    %162 = vmatpush1.bf16.msra.mxu0 0
    %163 = vmatprep.subr.bf16.mxu0 0
    %164 = vmatpush1.bf16.msra.mxu0 0
    %165 = vmatprep.subr.bf16.mxu0 0
    %166 = vmatpush1.bf16.msra.mxu0 0
    %167 = vmatprep.subr.bf16.mxu0 0
    %168 = vmatpush1.bf16.msra.mxu0 0
    %169 = vmatprep.mubr.bf16.mxu0 0
    %170 = vmatmul.mubr.bf16.gmra.mrb[0].mxu0 %v65
    %v171 = vpop.f32.mrb[0].mxu0
    %v172 = vadd.f32 %v87, %v171
    %v173 = vpop.f32.mrb[0].mxu0
    %v174 = vpop.f32.mrb[0].mxu0
    %v175 = vadd.f32 %v87, %v174
    %v176 = vpop.f32.mrb[0].mxu0
    %177 = vdwg.mxu0
    %v178 = vmul.f32 %v172, 0.5
    %v179 = vmul.f32 %v175, 0.5
    %v180 = vmul.f32 %v172, 0.70710677
    %v181 = vmul.f32 %v175, 0.70710677
    %v182 = verf.f32.pop %v180
    %v183 = verf.f32.pop %v181
    %v184 = vadd.f32 %v182, 1.0
    %v185 = vadd.f32 %v183, 1.0
    %v186 = vmul.f32 %v178, %v184
    %v187 = vmul.f32 %v179, %v185
    %v188 = vpack.c.bf16 %v187, %v186
    %v189 = vld [vmem:[#allocation7] sm:$0xf]
    %v190 = vld [vmem:[#allocation7 + $0x4] sm:$0xf]
    %v191 = vld [vmem:[#allocation7 + $0x8] sm:$0xf]
    %v192 = vld [vmem:[#allocation7 + $0xc] sm:$0xf]
    %v193 = vld [vmem:[#allocation7 + $0x10] sm:$0xf]
    %v194 = vld [vmem:[#allocation7 + $0x14] sm:$0xf]
    %v195 = vld [vmem:[#allocation7 + $0x18] sm:$0xf]
    %v196 = vld [vmem:[#allocation7 + $0x1c] sm:$0xf]
    %v197 = vld [vmem:[#allocation7 + $0x20] sm:$0xf]
    %v198 = vld [vmem:[#allocation7 + $0x24] sm:$0xf]
    %v199 = vld [vmem:[#allocation7 + $0x28] sm:$0xf]
    %v200 = vld [vmem:[#allocation7 + $0x2c] sm:$0xf]
    %v201 = vld [vmem:[#allocation7 + $0x30] sm:$0xf]
    %v202 = vld [vmem:[#allocation7 + $0x34] sm:$0xf]
    %v203 = vld [vmem:[#allocation7 + $0x38] sm:$0xf]
    %v204 = vld [vmem:[#allocation7 + $0x3c] sm:$0xf]
    %v205 = vld [vmem:[%s4] sm:$0x1]
    %v207 = vlaneseq
    %v208 = vshrl.u32 %v207, 7
    %v209 = vsub.s32 0, %v208
    %v210 = vrot.slane %v205, %v209
    %v228 = vunpack.c.l.b16 %v189
    %v229 = vunpack.c.l.b16 %v190
    %v230 = vunpack.c.l.b16 %v191
    %v231 = vunpack.c.l.b16 %v192
    %v232 = vunpack.c.l.b16 %v193
    %v233 = vunpack.c.l.b16 %v194
    %v234 = vunpack.c.l.b16 %v195
    %v235 = vunpack.c.l.b16 %v196
    %v236 = vunpack.c.l.b16 %v197
    %v237 = vunpack.c.l.b16 %v198
    %v238 = vunpack.c.l.b16 %v199
    %v239 = vunpack.c.l.b16 %v200
    %v240 = vunpack.c.l.b16 %v201
    %v241 = vunpack.c.l.b16 %v202
    %v242 = vunpack.c.l.b16 %v203
    %v243 = vunpack.c.l.b16 %v204
    %v244 = vpack.c.b16 %v229, %v228
    %v245 = vpack.c.b16 %v231, %v230
    %v246 = vpack.c.b16 %v233, %v232
    %v247 = vpack.c.b16 %v235, %v234
    %v248 = vpack.c.b16 %v237, %v236
    %v249 = vpack.c.b16 %v239, %v238
    %v250 = vpack.c.b16 %v241, %v240
    %v251 = vpack.c.b16 %v243, %v242
    %260 = vmatprep.subr.bf16.mxu0 0
    %261 = vmatpush1.bf16.msra.mxu0 %v244
    %262 = vmatprep.subr.bf16.mxu0 0
    %263 = vmatpush1.bf16.msra.mxu0 %v245
    %264 = vmatprep.subr.bf16.mxu0 0
    %265 = vmatpush1.bf16.msra.mxu0 %v246
    %266 = vmatprep.subr.bf16.mxu0 0
    %267 = vmatpush1.bf16.msra.mxu0 %v247
    %268 = vmatprep.subr.bf16.mxu0 0
    %269 = vmatpush1.bf16.msra.mxu0 %v248
    %270 = vmatprep.subr.bf16.mxu0 0
    %271 = vmatpush1.bf16.msra.mxu0 %v249
    %272 = vmatprep.subr.bf16.mxu0 0
    %273 = vmatpush1.bf16.msra.mxu0 %v250
    %274 = vmatprep.subr.bf16.mxu0 0
    %275 = vmatpush1.bf16.msra.mxu0 %v251
    %276 = vmatprep.subr.bf16.mxu0 0
    %277 = vmatpush1.bf16.msra.mxu0 0
    %278 = vmatprep.subr.bf16.mxu0 0
    %279 = vmatpush1.bf16.msra.mxu0 0
    %280 = vmatprep.subr.bf16.mxu0 0
    %281 = vmatpush1.bf16.msra.mxu0 0
    %282 = vmatprep.subr.bf16.mxu0 0
    %283 = vmatpush1.bf16.msra.mxu0 0
    %284 = vmatprep.subr.bf16.mxu0 0
    %285 = vmatpush1.bf16.msra.mxu0 0
    %286 = vmatprep.subr.bf16.mxu0 0
    %287 = vmatpush1.bf16.msra.mxu0 0
    %288 = vmatprep.subr.bf16.mxu0 0
    %289 = vmatpush1.bf16.msra.mxu0 0
    %290 = vmatprep.subr.bf16.mxu0 0
    %291 = vmatpush1.bf16.msra.mxu0 0
    %292 = vmatprep.mubr.bf16.mxu0 0
    %293 = vmatmul.mubr.bf16.gmra.mrb[0].mxu0 %v188
    %v294 = vpop.f32.mrb[0].mxu0
    %v295 = vadd.f32 %v210, %v294
    %v296 = vpop.f32.mrb[0].mxu0
    %v297 = vpop.f32.mrb[0].mxu0
    %v298 = vadd.f32 %v210, %v297
    %v299 = vpop.f32.mrb[0].mxu0
    %300 = vdwg.mxu0
    %301 = vst [vmem:[#allocation8] sm:$0xff] %v295
    %302 = vst [vmem:[#allocation8 + $0x8] sm:$0xff] %v298
    // Predicated region
    $region34: #{tpu_custom_call.1} parent=1 // pred_check
      _
    $region35: #{tpu_custom_call.1} parent=1 // pred_check_branch
      %304 = sbr.rel (0) target = $region37
    $region36: #{tpu_custom_call.1} parent=1 // pred_region
      %s306 = ssub.s32 256, 256
      %307 = vsyncadd [#allocation4], %s306
      %s308 = sshll.u32 [#allocation8], 4
      %s309 = int_to_ptr.vmem [resolvable:$true] %s308
      %314 = dma.vmem_to_hbm [thread:$0]  %s309, 256, %s5, [#allocation4], 128, 128, 8
    $region37: #{tpu_custom_call.1} parent=1 // pred_fallthru
      _
    // Predicated region
    $region38: #{tpu_custom_call.1} parent=1 // pred_check
      _
    $region39: #{tpu_custom_call.1} parent=1 // pred_check_branch
      %316 = sbr.rel (0) target = $region41
    $region40: #{tpu_custom_call.1} parent=1 // pred_region
      %317 = dma.done [#allocation4], 256
    $region41: #{tpu_custom_call.1} parent=1 // pred_fallthru
      _
    %318 = vsyncpa [#allocation3], 1
    %319 = vsyncpa [#allocation6], 1
    %320 = vsyncpa [#allocation4], 1

</llo_original>
